<compile_context>
chip_gen: v7x
topology: tpu7x:2x2x1
jax: 0.10.0
libtpu: 0.0.40
codegen_flags: <defaults>
</compile_context>

<pallas_src>
import functools

import numpy as np
import jax
import jax.numpy as jnp
from jax.experimental import pallas as pl
from jax.experimental.pallas import tpu as pltpu


# ---------------------------------------------------------------------------
# Tiling helpers
# ---------------------------------------------------------------------------
def _pick_tile(dim, target=256, floor=128):
    """Largest tile <= target (power-of-2 steps down to floor) dividing dim,
    else the full dim (small shapes fall back to a single whole block)."""
    if dim <= target:
        return dim
    t = target
    while t >= floor:
        if dim % t == 0:
            return t
        t //= 2
    return dim


def _pick_heads_per_block(bh, n, d, vmem_budget=8 * 1024 * 1024):
    """How many (batch*head) slices to process per attention grid step, sized
    against a conservative VMEM budget (works for v7x's 64 MiB as well)."""
    per_head = n * n * (4 + 4 + 2) + 4 * n * d * 2 + 2 * n * 4
    hb = max(1, min(bh, vmem_budget // max(per_head, 1)))
    if bh >= 2:
        hb = min(hb, max(1, bh // 2))  # keep >=2 grid steps so both v7x TCs get work
    while bh % hb != 0:
        hb -= 1
    return hb


# ---------------------------------------------------------------------------
# Kernel 1: tiled qkv matmul with K-axis f32 accumulator (qkv_bias=False)
# ---------------------------------------------------------------------------
def _matmul_kernel(x_ref, w_ref, o_ref, acc_ref):
    @pl.when(pl.program_id(2) == 0)
    def _():
        acc_ref[...] = jnp.zeros_like(acc_ref)

    acc_ref[...] += jnp.dot(x_ref[...], w_ref[...],
                            preferred_element_type=jnp.float32)

    @pl.when(pl.program_id(2) == pl.num_programs(2) - 1)
    def _():
        o_ref[...] = acc_ref[...].astype(o_ref.dtype)


def linear(x2d, w, *, out_dtype=None, tm=256, tn=256, tk=512):
    """Tiled, pipelined y = x2d @ w. Grid (M/tm, N/tn, K/tk); K axis is the
    reduction ('arbitrary'), M/N are 'parallel' (megacore)."""
    M, K = x2d.shape
    K2, Nout = w.shape
    assert K == K2
    if out_dtype is None:
        out_dtype = x2d.dtype
    tm, tn, tk = _pick_tile(M, tm), _pick_tile(Nout, tn), _pick_tile(K, tk)
    grid = (M // tm, Nout // tn, K // tk)

    bytes_accessed = (M * K * x2d.dtype.itemsize
                      + K * Nout * w.dtype.itemsize
                      + M * Nout * np.dtype(out_dtype).itemsize)
    cost = pl.CostEstimate(flops=2 * M * K * Nout, transcendentals=0,
                           bytes_accessed=bytes_accessed)

    return pl.pallas_call(
        _matmul_kernel,
        out_shape=jax.ShapeDtypeStruct((M, Nout), out_dtype),
        grid_spec=pltpu.PrefetchScalarGridSpec(
            num_scalar_prefetch=0,
            grid=grid,
            in_specs=[pl.BlockSpec((tm, tk), lambda i, j, k: (i, k)),
                      pl.BlockSpec((tk, tn), lambda i, j, k: (k, j))],
            out_specs=pl.BlockSpec((tm, tn), lambda i, j, k: (i, j)),
            scratch_shapes=[pltpu.VMEM((tm, tn), jnp.float32)],
        ),
        compiler_params=pltpu.CompilerParams(
            dimension_semantics=("parallel", "parallel", "arbitrary")),
        cost_estimate=cost,
    )(x2d, w)


# ---------------------------------------------------------------------------
# Kernel 2: attention over a block of (batch*head) slices:
#   softmax((q*scale) k^T) v   — NT contraction (no k.T), f32 softmax,
#   EUP approximate reciprocal for the denominator.
# ---------------------------------------------------------------------------
def _attention_kernel(q_ref, k_ref, v_ref, attn_ref, o_ref, *, scale):
    q = q_ref[...] * scale                     # pre-scale q: O(N*D) not O(N*N)
    k = k_ref[...]
    v = v_ref[...]
    # batched NT matmul: contract last axis of q and k directly on the MXU
    s = jnp.einsum('hqd,hkd->hqk', q, k, preferred_element_type=jnp.float32)
    m = jnp.max(s, axis=-1, keepdims=True)
    e = jnp.exp(s - m)
    denom = jnp.sum(e, axis=-1, keepdims=True)
    p = e * pl.reciprocal(denom, approx=True)  # EUP slot, frees VALU
    attn_ref[...] = p.astype(attn_ref.dtype)
    o = jnp.einsum('hqk,hkd->hqd', p.astype(v.dtype), v,
                   preferred_element_type=jnp.float32)
    o_ref[...] = o.astype(o_ref.dtype)


def multihead_attention(q, k, v, scale, *, attn_dtype=jnp.float32):
    # q, k, v: (B*H, N, D) — several heads per grid step for denser blocks and
    # fewer tiny grid iterations.
    BH, N, D = q.shape
    hb = _pick_heads_per_block(BH, N, D)
    grid = (BH // hb,)
    blk_qkv = pl.BlockSpec((hb, N, D), lambda i: (i, 0, 0))
    blk_attn = pl.BlockSpec((hb, N, N), lambda i: (i, 0, 0))
    kernel = functools.partial(_attention_kernel, scale=scale)
    itemsize = q.dtype.itemsize
    cost = pl.CostEstimate(
        flops=4 * BH * N * N * D,
        transcendentals=BH * N * N,
        bytes_accessed=(4 * BH * N * D * itemsize
                        + BH * N * N * np.dtype(attn_dtype).itemsize),
    )
    # TODO(synk): if the attention matrix output were not a module output we
    # could drop it and switch to a flash-style online softmax to remove the
    # O(B*H*N^2) HBM write.
    attn, ctx = pl.pallas_call(
        kernel,
        grid=grid,
        out_shape=(
            jax.ShapeDtypeStruct((BH, N, N), attn_dtype),
            jax.ShapeDtypeStruct((BH, N, D), q.dtype),
        ),
        in_specs=[blk_qkv, blk_qkv, blk_qkv],
        out_specs=(blk_attn, blk_qkv),
        compiler_params=pltpu.CompilerParams(
            dimension_semantics=("parallel",)),
        cost_estimate=cost,
    )(q, k, v)
    return attn, ctx


# ---------------------------------------------------------------------------
# Kernel 3: output projection with the head-merge transpose fused in.
#   out[b, n, :] = sum_h ctx[b, h, n, :] @ W[h*D:(h+1)*D, :] + bias
# Reads ctx directly in (B, H, N, D) layout (free reshape of the attention
# output), so no (B,H,N,D)->(B,N,C) transpose HBM round trip is needed.
# ---------------------------------------------------------------------------
def _proj_kernel(ctx_ref, w_ref, b_ref, o_ref, acc_ref):
    h = pl.program_id(2)

    @pl.when(h == 0)
    def _():
        acc_ref[...] = jnp.zeros_like(acc_ref)

    acc_ref[...] += jnp.dot(ctx_ref[0, 0], w_ref[0],
                            preferred_element_type=jnp.float32)

    @pl.when(h == pl.num_programs(2) - 1)
    def _():
        o_ref[0] = (acc_ref[...] + b_ref[...].astype(jnp.float32)).astype(o_ref.dtype)


def proj_linear(ctx_bhnd, w_proj, b_proj, *, out_dtype=jnp.float32, tn=256):
    B, H, N, D = ctx_bhnd.shape
    C = H * D
    assert w_proj.shape[0] == C
    Cout = w_proj.shape[1]
    tn = _pick_tile(Cout, tn)
    w3 = w_proj.reshape(H, D, Cout)           # row group h == head h's weights
    b2 = b_proj.reshape(1, Cout)
    grid = (B, Cout // tn, H)                 # head axis last = reduction axis
    cost = pl.CostEstimate(
        flops=2 * B * N * C * Cout, transcendentals=0,
        bytes_accessed=(ctx_bhnd.size * ctx_bhnd.dtype.itemsize
                        + w3.size * w3.dtype.itemsize
                        + B * N * Cout * np.dtype(out_dtype).itemsize),
    )
    return pl.pallas_call(
        _proj_kernel,
        out_shape=jax.ShapeDtypeStruct((B, N, Cout), out_dtype),
        grid_spec=pltpu.PrefetchScalarGridSpec(
            num_scalar_prefetch=0,
            grid=grid,
            in_specs=[
                pl.BlockSpec((1, 1, N, D), lambda b, j, h: (b, h, 0, 0)),
                pl.BlockSpec((1, D, tn), lambda b, j, h: (h, 0, j)),
                pl.BlockSpec((1, tn), lambda b, j, h: (0, j)),
            ],
            out_specs=pl.BlockSpec((1, N, tn), lambda b, j, h: (b, 0, j)),
            scratch_shapes=[pltpu.VMEM((N, tn), jnp.float32)],
        ),
        compiler_params=pltpu.CompilerParams(
            dimension_semantics=("parallel", "parallel", "arbitrary")),
        cost_estimate=cost,
    )(ctx_bhnd, w3, b2)


# ---------------------------------------------------------------------------
# Full Attention module forward (mask=None path; dropouts identity in eval)
# ---------------------------------------------------------------------------
def attention_forward(x, params, num_heads, *, compute_dtype=jnp.bfloat16):
    # x: (B, N, C)
    B, N, C = x.shape
    assert C % num_heads == 0
    D = C // num_heads
    scale = D ** (-0.5)

    # qkv projection (qkv_bias=False): bf16 MXU inputs, f32 accumulation.
    x2d = x.reshape(B * N, C).astype(compute_dtype)
    w_qkv = params["w_qkv"].astype(compute_dtype)
    qkv = linear(x2d, w_qkv, out_dtype=compute_dtype)          # (B*N, 3C)

    # reshape exactly like torch: (B, N, 3, H, D) -> (3, B, H, N, D)
    # TODO(synk): fusing this head-split transpose into the attention kernel's
    # BlockSpecs needs a size-1 second-minor block (H axis), which violates the
    # (8,128) block rule, so it stays as an XLA transpose.
    qkv = qkv.reshape(B, N, 3, num_heads, D).transpose(2, 0, 3, 1, 4)
    q = qkv[0].reshape(B * num_heads, N, D)
    k = qkv[1].reshape(B * num_heads, N, D)
    v = qkv[2].reshape(B * num_heads, N, D)

    # TODO(synk): mask path (masked_fill with -inf) not implemented (mask=None);
    # attn/proj dropout are identity in eval mode.
    attn, ctx = multihead_attention(q, k, v, scale)  # (BH,N,N) f32, (BH,N,D) bf16

    # output projection: head-merge + bias fused in the kernel, f32 output.
    ctx = ctx.reshape(B, num_heads, N, D)                       # free reshape
    out = proj_linear(ctx, params["w_proj"].astype(compute_dtype),
                      params["b_proj"], out_dtype=jnp.float32)  # (B, N, C)
    return out, attn.reshape(B, num_heads, N, N)


# ---------------------------------------------------------------------------
# Pure-JAX reference (f32) for correctness checking
# ---------------------------------------------------------------------------
def attention_forward_ref(x, params, num_heads):
    B, N, C = x.shape
    D = C // num_heads
    scale = D ** (-0.5)
    qkv = (x.reshape(B * N, C) @ params["w_qkv"]).reshape(B, N, 3, num_heads, D)
    qkv = qkv.transpose(2, 0, 3, 1, 4)
    q, k, v = qkv[0], qkv[1], qkv[2]
    s = jnp.einsum('bhnd,bhmd->bhnm', q, k) * scale
    attn = jax.nn.softmax(s, axis=-1)
    ctx = jnp.einsum('bhnm,bhmd->bhnd', attn, v)
    out = ctx.transpose(0, 2, 1, 3).reshape(B * N, C) @ params["w_proj"] + params["b_proj"]
    return out.reshape(B, N, C), attn


def init_params(key, dim):
    k1, k2, k3 = jax.random.split(key, 3)
    # Stored as (in, out) so matmul is x @ w (torch stores (out, in); same math).
    w_qkv = jax.random.normal(k1, (dim, 3 * dim), jnp.float32) * 0.02
    w_proj = jax.random.normal(k2, (dim, dim), jnp.float32) * 0.02
    b_proj = jax.random.normal(k3, (dim,), jnp.float32) * 0.02
    return {"w_qkv": w_qkv, "w_proj": w_proj, "b_proj": b_proj}


if __name__ == "__main__":
    B, N, C = 2, 8, 32
    num_heads = 4

    key = jax.random.PRNGKey(0)
    kx, kp = jax.random.split(key)
    x = jax.random.normal(kx, (B, N, C), jnp.float32)
    params = init_params(kp, C)

    out, attn = attention_forward(x, params, num_heads)
    out = jax.block_until_ready(out)
    attn = jax.block_until_ready(attn)

    # sanity: shapes and softmax normalization (approx reciprocal -> loose tol)
    assert out.shape == (B, N, C)
    assert attn.shape == (B, num_heads, N, N)
    row_sums = jnp.sum(attn, axis=-1)
    assert bool(jnp.allclose(row_sums, 1.0, atol=2e-2))

    # compare against pure-JAX f32 reference (bf16 MXU inputs -> loose tol)
    out_ref, attn_ref = attention_forward_ref(x, params, num_heads)
    assert bool(jnp.allclose(out, out_ref, atol=2e-2, rtol=2e-2))
    assert bool(jnp.allclose(attn, attn_ref, atol=2e-2, rtol=2e-2))

    print("KERNEL_OK")
</pallas_src>

<mosaic_0001>
module attributes {stable_mosaic.version = 11 : i64} {
  func.func @_matmul_kernel(%arg0: i32, %arg1: i32, %arg2: i32, %arg3: memref<16x32xbf16, #tpu.memory_space<vmem>>, %arg4: memref<32x96xbf16, #tpu.memory_space<vmem>>, %arg5: memref<16x96xbf16, #tpu.memory_space<vmem>>, %arg6: memref<16x96xf32, #tpu.memory_space<vmem>>) attributes {dimension_semantics = [#tpu.dimension_semantics<parallel>, #tpu.dimension_semantics<parallel>, #tpu.dimension_semantics<arbitrary>], iteration_bounds = array<i64: 1, 1, 1>, scalar_prefetch = 0 : i64, scratch_operands = 1 : i64, tpu.core_type = #tpu.core_type<tc>, window_params = [{transform_indices = @transform_0, window_bounds = array<i64: 16, 32>}, {transform_indices = @transform_1, window_bounds = array<i64: 32, 96>}, {transform_indices = @transform_2, window_bounds = array<i64: 16, 96>}]} {
    %c0_i32 = arith.constant 0 : i32
    %0 = arith.cmpi eq, %arg2, %c0_i32 : i32
    %1 = arith.extui %0 : i1 to i32
    %c0_i32_0 = arith.constant 0 : i32
    %2 = arith.cmpi ne, %1, %c0_i32_0 : i32
    scf.if %2 {
      %cst_10 = arith.constant 0.000000e+00 : f32
      %12 = vector.broadcast %cst_10 : f32 to vector<16x96xf32>
      %c0_11 = arith.constant 0 : index
      %c0_12 = arith.constant 0 : index
      %13 = vector.load %arg6[%c0_11, %c0_12] : memref<16x96xf32, #tpu.memory_space<vmem>>, vector<16x96xf32>
      tpu.vector_store %arg6[%c0_11, %c0_12], %12 {strides = array<i32>} : memref<16x96xf32, #tpu.memory_space<vmem>>, vector<16x96xf32>,
    } else {
    }
    %c0 = arith.constant 0 : index
    %c0_1 = arith.constant 0 : index
    %3 = vector.load %arg6[%c0, %c0_1] : memref<16x96xf32, #tpu.memory_space<vmem>>, vector<16x96xf32>
    %c0_2 = arith.constant 0 : index
    %c0_3 = arith.constant 0 : index
    %4 = vector.load %arg3[%c0_2, %c0_3] : memref<16x32xbf16, #tpu.memory_space<vmem>>, vector<16x32xbf16>
    %c0_4 = arith.constant 0 : index
    %c0_5 = arith.constant 0 : index
    %5 = vector.load %arg4[%c0_4, %c0_5] : memref<32x96xbf16, #tpu.memory_space<vmem>>, vector<32x96xbf16>
    %cst = arith.constant dense<0.000000e+00> : vector<16x96xf32>
    %6 = tpu.matmul %4, %5, %cst {dimension_numbers = #tpu.dot_dimension_numbers<[1], [0], [0], [1], [0, 0, 1, 1], [], []>} : vector<16x32xbf16>, vector<32x96xbf16>, vector<16x96xf32> -> vector<16x96xf32>
    %7 = arith.addf %3, %6 : vector<16x96xf32>
    %c0_6 = arith.constant 0 : index
    %c0_7 = arith.constant 0 : index
    %8 = vector.load %arg6[%c0_6, %c0_7] : memref<16x96xf32, #tpu.memory_space<vmem>>, vector<16x96xf32>
    tpu.vector_store %arg6[%c0_6, %c0_7], %7 {strides = array<i32>} : memref<16x96xf32, #tpu.memory_space<vmem>>, vector<16x96xf32>,
    %c0_i32_8 = arith.constant 0 : i32
    %9 = arith.cmpi eq, %arg2, %c0_i32_8 : i32
    %10 = arith.extui %9 : i1 to i32
    %c0_i32_9 = arith.constant 0 : i32
    %11 = arith.cmpi ne, %10, %c0_i32_9 : i32
    scf.if %11 {
      %c0_10 = arith.constant 0 : index
      %c0_11 = arith.constant 0 : index
      %12 = vector.load %arg6[%c0_10, %c0_11] : memref<16x96xf32, #tpu.memory_space<vmem>>, vector<16x96xf32>
      %13 = arith.truncf %12 : vector<16x96xf32> to vector<16x96xbf16>
      %c0_12 = arith.constant 0 : index
      %c0_13 = arith.constant 0 : index
      %14 = vector.load %arg5[%c0_12, %c0_13] : memref<16x96xbf16, #tpu.memory_space<vmem>>, vector<16x96xbf16>
      tpu.vector_store %arg5[%c0_12, %c0_13], %13 {strides = array<i32>} : memref<16x96xbf16, #tpu.memory_space<vmem>>, vector<16x96xbf16>,
    } else {
    }
    return
  }
  func.func @transform_0(%arg0: i32, %arg1: i32, %arg2: i32) -> (i32, i32) {
    %c0_i32 = arith.constant 0 : i32
    return %arg0, %arg2 : i32, i32
  }
  func.func @transform_1(%arg0: i32, %arg1: i32, %arg2: i32) -> (i32, i32) {
    %c0_i32 = arith.constant 0 : i32
    return %arg2, %arg1 : i32, i32
  }
  func.func @transform_2(%arg0: i32, %arg1: i32, %arg2: i32) -> (i32, i32) {
    %c0_i32 = arith.constant 0 : i32
    return %arg0, %arg1 : i32, i32
  }
}

</mosaic_0001>

<llo_original>
// kernel: tpu_custom_call.1
$region0: #{tpu_custom_call.1}
  #allocation0 [shape = 'u32[]', space=smem, size = 0x4, offset = 0x4, fixed_abs, tag = 'smem constant byte address 0x4 - core index']
  #allocation1 [shape = 'u32[144,128]{1,0:T(1,128)}', space=vmem, size = 0x12000, scoped, tag = 'internal scratch']
  #allocation2 [shape = 'f32[16,96]{1,0:T(8,128)}', space=vmem, size = 0x2000, scoped, tag = 'scratch operand']
  %s0 = inlined_call_operand.hbm [shape: bf16[16,32], index: 0, kind: input, shape index: {}]
  %s1 = inlined_call_operand.hbm [shape: bf16[32,96], index: 1, kind: input, shape index: {}]
  %s2 = inlined_call_operand.hbm [shape: bf16[16,96], index: 2, kind: output, shape index: {}]
  %s3 = sld [smem:[#allocation0]]
  $region34: #{tpu_custom_call.1} parent=0
    _
  %s5 = ssub.s32 1, %s3
  %s6 = scalar_select 0, %s5, %s3
  $region1: #{tpu_custom_call.1} parent=0
    #allocation3 [shape = 'u8[4096]{0}', space=vmem, size = 0x1000, scoped, tag = 'input window, operand 0, single buffered']
    #allocation4 [shape = 's32[1]{0}', space=sflag, size = 0x4, scoped, tag = 'scoped memory for tpu_custom_call.1']
    #allocation5 [shape = 's32[1]{0}', space=sflag, size = 0x4, scoped, tag = 'scoped memory for tpu_custom_call.1']
    #allocation6 [shape = 'u8[8192]{0}', space=vmem, size = 0x2000, scoped, tag = 'input window, operand 1, single buffered']
    #allocation7 [shape = 's32[1]{0}', space=sflag, size = 0x4, scoped, tag = 'scoped memory for tpu_custom_call.1']
    #allocation8 [shape = 'u8[4096]{0}', space=vmem, size = 0x1000, scoped, tag = 'output window, operand 0, single buffered']
    %7 = vsyncpa [#allocation4], 0
    %8 = vsyncpa [#allocation7], 0
    %9 = vsyncpa [#allocation5], 0
    // Predicated region
    $region2: #{tpu_custom_call.1} parent=1 // pred_check
      _
    $region3: #{tpu_custom_call.1} parent=1 // pred_check_branch
      %11 = sbr.rel (0) target = $region5
    $region4: #{tpu_custom_call.1} parent=1 // pred_region
      %s13 = ssub.s32 128, 128
      %14 = vsyncadd [#allocation4], %s13
      %s15 = sshll.u32 [#allocation3], 4
      %s16 = int_to_ptr.vmem [resolvable:$true] %s15
      %21 = dma.hbm_to_vmem [thread:$0]  %s0, 128, %s16, [#allocation4], 64, 64, 4
    $region5: #{tpu_custom_call.1} parent=1 // pred_fallthru
      _
    // Predicated region
    $region6: #{tpu_custom_call.1} parent=1 // pred_check
      _
    $region7: #{tpu_custom_call.1} parent=1 // pred_check_branch
      %23 = sbr.rel (0) target = $region9
    $region8: #{tpu_custom_call.1} parent=1 // pred_region
      %s25 = ssub.s32 256, 256
      %26 = vsyncadd [#allocation7], %s25
      %s27 = sshll.u32 [#allocation6], 4
      %s28 = int_to_ptr.vmem [resolvable:$true] %s27
      %33 = dma.hbm_to_vmem [thread:$0]  %s1, 256, %s28, [#allocation7], 64, 64, 4
    $region9: #{tpu_custom_call.1} parent=1 // pred_fallthru
      _
    // Predicated region
    $region10: #{tpu_custom_call.1} parent=1 // pred_check
      _
    $region11: #{tpu_custom_call.1} parent=1 // pred_check_branch
      %35 = sbr.rel (0) target = $region13
    $region12: #{tpu_custom_call.1} parent=1 // pred_region
      %36 = dma.done [#allocation4], 128
    $region13: #{tpu_custom_call.1} parent=1 // pred_fallthru
      _
    // Predicated region
    $region14: #{tpu_custom_call.1} parent=1 // pred_check
      _
    $region15: #{tpu_custom_call.1} parent=1 // pred_check_branch
      %38 = sbr.rel (0) target = $region17
    $region16: #{tpu_custom_call.1} parent=1 // pred_region
      %39 = dma.done [#allocation7], 256
    $region17: #{tpu_custom_call.1} parent=1 // pred_fallthru
      _
    %p41 = scmp.eq.s32.totalorder 0, 0
    // Predicated region
    $region18: #{tpu_custom_call.1} parent=1 // pred_check
      %p42 = pneg %p41
    $region19: #{tpu_custom_call.1} parent=1 // pred_check_branch
      %44 = sbr.rel (%p42) target = $region21
    $region20: #{tpu_custom_call.1} parent=1 // pred_region
      %vm45 = vcmask 785408
      %46 = vst.msk [vmem:[#allocation2] sm:$0xff] %vm45, 0.0
      %47 = vst.msk [vmem:[#allocation2 + $0x8] sm:$0xff] %vm45, 0.0
    $region21: #{tpu_custom_call.1} parent=1 // pred_fallthru
      _
    %v48 = vld [vmem:[#allocation2] sm:$0xff]
    %v49 = vld [vmem:[#allocation2 + $0x8] sm:$0xff]
    %v50 = vld [vmem:[#allocation3] sm:$0xf]
    %v51 = vld [vmem:[#allocation3 + $0x4] sm:$0xf]
    %v52 = vld [vmem:[#allocation6] sm:$0xf]
    %v53 = vld [vmem:[#allocation6 + $0x4] sm:$0xf]
    %v54 = vld [vmem:[#allocation6 + $0x8] sm:$0xf]
    %v55 = vld [vmem:[#allocation6 + $0xc] sm:$0xf]
    %v58 = vunpack.c.l.b16 %v50
    %v59 = vunpack.c.l.b16 %v51
    %v60 = vpack.c.b16 %v59, %v58
    %v65 = vunpack.c.l.b16 %v52
    %v66 = vunpack.c.l.b16 %v53
    %v67 = vunpack.c.l.b16 %v54
    %v68 = vunpack.c.l.b16 %v55
    %v69 = vpack.c.b16 %v66, %v65
    %v70 = vpack.c.b16 %v68, %v67
    %vm73 = vcmask 261120
    %v75 = vsel %vm73, %v60, 0
    %77 = vmatprep.subr.bf16.mxu0 0
    %78 = vmatpush1.bf16.msra.mxu0 %v69
    %79 = vmatprep.subr.bf16.mxu0 0
    %80 = vmatpush1.bf16.msra.mxu0 %v70
    %81 = vmatprep.subr.bf16.mxu0 0
    %82 = vmatpush1.bf16.msra.mxu0 0
    %83 = vmatprep.subr.bf16.mxu0 0
    %84 = vmatpush1.bf16.msra.mxu0 0
    %85 = vmatprep.subr.bf16.mxu0 0
    %86 = vmatpush1.bf16.msra.mxu0 0
    %87 = vmatprep.subr.bf16.mxu0 0
    %88 = vmatpush1.bf16.msra.mxu0 0
    %89 = vmatprep.subr.bf16.mxu0 0
    %90 = vmatpush1.bf16.msra.mxu0 0
    %91 = vmatprep.subr.bf16.mxu0 0
    %92 = vmatpush1.bf16.msra.mxu0 0
    %93 = vmatprep.subr.bf16.mxu0 0
    %94 = vmatpush1.bf16.msra.mxu0 0
    %95 = vmatprep.subr.bf16.mxu0 0
    %96 = vmatpush1.bf16.msra.mxu0 0
    %97 = vmatprep.subr.bf16.mxu0 0
    %98 = vmatpush1.bf16.msra.mxu0 0
    %99 = vmatprep.subr.bf16.mxu0 0
    %100 = vmatpush1.bf16.msra.mxu0 0
    %101 = vmatprep.subr.bf16.mxu0 0
    %102 = vmatpush1.bf16.msra.mxu0 0
    %103 = vmatprep.subr.bf16.mxu0 0
    %104 = vmatpush1.bf16.msra.mxu0 0
    %105 = vmatprep.subr.bf16.mxu0 0
    %106 = vmatpush1.bf16.msra.mxu0 0
    %107 = vmatprep.subr.bf16.mxu0 0
    %108 = vmatpush1.bf16.msra.mxu0 0
    %109 = vmatprep.mubr.bf16.mxu0 0
    %110 = vmatmul.mubr.bf16.gmra.mrb[0].mxu0 %v75
    %v111 = vpop.f32.mrb[0].mxu0
    %v112 = vadd.f32 0.0, %v111
    %v113 = vpop.f32.mrb[0].mxu0
    %v114 = vpop.f32.mrb[0].mxu0
    %v115 = vadd.f32 0.0, %v114
    %v116 = vpop.f32.mrb[0].mxu0
    %117 = vdwg.mxu0
    %v118 = vadd.f32 %v48, %v112
    %v119 = vadd.f32 %v49, %v115
    %vm120 = vcmask 785408
    %121 = vst.msk [vmem:[#allocation2] sm:$0xff] %vm120, %v118
    %122 = vst.msk [vmem:[#allocation2 + $0x8] sm:$0xff] %vm120, %v119
    // Predicated region
    $region22: #{tpu_custom_call.1} parent=1 // pred_check
      %p123 = pneg %p41
    $region23: #{tpu_custom_call.1} parent=1 // pred_check_branch
      %125 = sbr.rel (%p123) target = $region25
    $region24: #{tpu_custom_call.1} parent=1 // pred_region
      %v126 = vld [vmem:[#allocation2] sm:$0xff]
      %v127 = vld [vmem:[#allocation2 + $0x8] sm:$0xff]
      %v128 = vpack.c.bf16 %v127, %v126
      %v130 = vunpack.c.l.b16 %v128
      %v131 = vunpack.c.h.b16 %v128
      %v132 = vpack.c.b16 %v130, %v130
      %v133 = vpack.c.b16 %v131, %v131
      %vm136 = vcmask 781312
      %137 = vst.msk [vmem:[#allocation8] sm:$0xf] %vm136, %v132
      %138 = vst.msk [vmem:[#allocation8 + $0x4] sm:$0xf] %vm136, %v133
    $region25: #{tpu_custom_call.1} parent=1 // pred_fallthru
      _
    // Predicated region
    $region26: #{tpu_custom_call.1} parent=1 // pred_check
      _
    $region27: #{tpu_custom_call.1} parent=1 // pred_check_branch
      %140 = sbr.rel (0) target = $region29
    $region28: #{tpu_custom_call.1} parent=1 // pred_region
      %s142 = ssub.s32 128, 128
      %143 = vsyncadd [#allocation5], %s142
      %s144 = sshll.u32 [#allocation8], 4
      %s145 = int_to_ptr.vmem [resolvable:$true] %s144
      %150 = dma.vmem_to_hbm [thread:$0]  %s145, 128, %s2, [#allocation5], 64, 64, 4
    $region29: #{tpu_custom_call.1} parent=1 // pred_fallthru
      _
    // Predicated region
    $region30: #{tpu_custom_call.1} parent=1 // pred_check
      _
    $region31: #{tpu_custom_call.1} parent=1 // pred_check_branch
      %152 = sbr.rel (0) target = $region33
    $region32: #{tpu_custom_call.1} parent=1 // pred_region
      %153 = dma.done [#allocation5], 128
    $region33: #{tpu_custom_call.1} parent=1 // pred_fallthru
      _
    %154 = vsyncpa [#allocation4], 1
    %155 = vsyncpa [#allocation7], 1
    %156 = vsyncpa [#allocation5], 1

</llo_original>
